<compile_context>
chip_gen: v7x
topology: tpu7x:2x2x1
jax: 0.10.0
libtpu: 0.0.40
codegen_flags: <defaults>
</compile_context>

<pallas_src>
import jax
import jax.numpy as jnp
from jax import lax
from jax.experimental import pallas as pl
from jax.experimental.pallas import tpu as pltpu

NEG_SLOPE = 0.2


def gat2_kernel(x_ref, mask_ref, w1_ref, w2_ref, p_ref, out_ref):
    # Additive softmax mask (0 on edges incl. self-loops, -1e30 off-edge),
    # loaded once and shared by both layers.
    mask = mask_ref[...]                                           # [N, N] f32

    # Packed small params: rows = (att_src1, bias1, att_src2, bias2).
    prm = p_ref[...]                                               # [4, C]
    as1, b1 = prm[0:1, :], prm[1:2, :]
    as2, b2 = prm[2:3, :], prm[3:4, :]

    def gat_layer(x, w_ext_ref, a_src_vec, bias, apply_relu):
        c = w_ext_ref.shape[1] - 1
        # Projection + folded att_dst column in one MXU push: [N, C+1].
        h_ext = jnp.dot(x, w_ext_ref[...], preferred_element_type=jnp.float32)
        h = h_ext[:, :c]                                           # [N, C]
        a_dst = h_ext[:, c:c + 1]                                  # [N, 1]

        # Source term directly along lanes: [1,C] x [N,C]^T -> [1, N] (MXU).
        a_src = lax.dot_general(
            a_src_vec, h,
            dimension_numbers=(((1,), (1,)), ((), ())),
            preferred_element_type=jnp.float32)                    # [1, N]

        # e[i, j] = LeakyReLU(a_dst[i] + a_src[j]) + mask[i, j]
        e = a_dst + a_src                                          # [N, N]
        e = jnp.where(e > 0, e, NEG_SLOPE * e)
        e = e + mask                                               # vadd mask

        # Row softmax over incoming edges j, with normalization deferred past
        # the aggregation matmul.  Self-loops keep the row max finite, so exp
        # underflows to exactly 0 on non-edges (no re-mask needed).
        p = jnp.exp(e - jnp.max(e, axis=1, keepdims=True))         # [N, N]
        rowsum = jnp.sum(p, axis=1, keepdims=True)                 # [N, 1]

        out = jnp.dot(p, h, preferred_element_type=jnp.float32)    # [N, C]
        out = out * pl.reciprocal(rowsum, approx=False) + bias
        return jnp.maximum(out, 0.0) if apply_relu else out

    h1 = gat_layer(x_ref[...], w1_ref, as1, b1, True)
    out = gat_layer(h1, w2_ref, as2, b2, False)
    out_ref[...] = out.astype(out_ref.dtype)


def gat_forward(x, adj, params):
    """Fused 2-layer GAT: conv -> ReLU -> conv (heads=1)."""
    w1, as1, ad1, b1, w2, as2, ad2, b2 = params
    n = x.shape[0]
    c = w2.shape[1]

    # Fold att_dst into the projection (one extra MXU output column per layer).
    w1_ext = jnp.concatenate([w1, w1 @ ad1.T], axis=1)             # [F,  C+1]
    w2_ext = jnp.concatenate([w2, w2 @ ad2.T], axis=1)             # [C,  C+1]
    # Pack the remaining tiny [1,C] params into one tile (one DMA, not four).
    prm = jnp.concatenate([as1, b1, as2, b2], axis=0)              # [4, C]
    # Additive softmax mask, applied after the LeakyReLU inside the kernel.
    mask = jnp.where(adj > 0, 0.0, -1e30).astype(jnp.float32)      # [N, N]

    vmem = pl.BlockSpec(memory_space=pltpu.MemorySpace.VMEM)
    # TODO(synk): for large N, switch to a destination-row x source-column
    # tiled grid with flash-style online softmax (live VMEM O(tm*tn + tm*C),
    # sized for v7x's 64 MiB VMEM), dimension_semantics=("parallel", ...) so a
    # batched / multi-graph workload shards across v7x's two TensorCores,
    # scalar-prefetched per-block nonzero flags to skip empty adjacency blocks
    # (~10% edge density), and bf16 MXU operands for the aggregation matmul.
    # At N=64 the whole problem is a handful of vregs, so one fused
    # whole-array invocation is fastest.
    return pl.pallas_call(
        gat2_kernel,
        out_shape=jax.ShapeDtypeStruct((n, c), jnp.float32),
        in_specs=[vmem] * 5,
        out_specs=vmem,
    )(x, mask, w1_ext, w2_ext, prm)


def gat_layer_ref(x, w, att_src, att_dst, bias, adj, apply_relu):
    # Pure-JAX reference faithful to PyG GATConv (heads=1) semantics.
    h = x @ w
    a_src = jnp.sum(h * att_src, axis=1)
    a_dst = jnp.sum(h * att_dst, axis=1)
    e = a_dst[:, None] + a_src[None, :]
    e = jnp.where(e > 0, e, NEG_SLOPE * e)
    edge = adj > 0
    e = jnp.where(edge, e, -1e30)
    p = jnp.exp(e - e.max(axis=1, keepdims=True)) * edge.astype(jnp.float32)
    attn = p / p.sum(axis=1, keepdims=True)
    out = attn @ h + bias
    return jnp.maximum(out, 0.0) if apply_relu else out


if __name__ == "__main__":
    N = 64            # number of graph nodes
    IN_CH = 16        # node feature dim (df_nodes columns in the original code)
    HIDDEN = 32       # hidden_channels
    HEADS = 1

    key = jax.random.PRNGKey(0)
    (k_x, k_e, k_w1, k_s1, k_d1, k_w2, k_s2, k_d2) = jax.random.split(key, 8)

    # Node features.
    x = jax.random.normal(k_x, (N, IN_CH), jnp.float32)

    # Random undirected edge set -> dense adjacency mask + self loops.
    rand_adj = (jax.random.uniform(k_e, (N, N)) < 0.1).astype(jnp.float32)
    adj_f = jnp.maximum(rand_adj, rand_adj.T)                     # to_undirected
    adj_f = jnp.maximum(adj_f, jnp.eye(N, dtype=jnp.float32))     # add_self_loops
    adj = adj_f.astype(jnp.int8)

    # Deterministic parameter init (synthetic; PyG would use glorot).
    scale = 0.1
    w1 = jax.random.normal(k_w1, (IN_CH, HIDDEN), jnp.float32) * scale
    att_src1 = jax.random.normal(k_s1, (1, HIDDEN), jnp.float32) * scale
    att_dst1 = jax.random.normal(k_d1, (1, HIDDEN), jnp.float32) * scale
    bias1 = jnp.zeros((1, HIDDEN), jnp.float32)
    w2 = jax.random.normal(k_w2, (HEADS * HIDDEN, HIDDEN), jnp.float32) * scale
    att_src2 = jax.random.normal(k_s2, (1, HIDDEN), jnp.float32) * scale
    att_dst2 = jax.random.normal(k_d2, (1, HIDDEN), jnp.float32) * scale
    bias2 = jnp.zeros((1, HIDDEN), jnp.float32)

    params = (w1, att_src1, att_dst1, bias1, w2, att_src2, att_dst2, bias2)

    out = jax.jit(gat_forward)(x, adj, params)
    out = jax.block_until_ready(out)

    # Pure-JAX reference check.
    h_ref = gat_layer_ref(x, w1, att_src1, att_dst1, bias1, adj_f, True)
    out_ref = gat_layer_ref(h_ref, w2, att_src2, att_dst2, bias2, adj_f, False)
    assert out.shape == (N, HIDDEN)
    assert jnp.allclose(out, out_ref, rtol=1e-4, atol=1e-4)

    print("KERNEL_OK")
</pallas_src>

<mosaic_0001>
module attributes {stable_mosaic.version = 11 : i64} {
  func.func @gat2_kernel(%arg0: memref<64x16xf32, #tpu.memory_space<vmem>>, %arg1: memref<64x64xf32, #tpu.memory_space<vmem>>, %arg2: memref<16x33xf32, #tpu.memory_space<vmem>>, %arg3: memref<32x33xf32, #tpu.memory_space<vmem>>, %arg4: memref<4x32xf32, #tpu.memory_space<vmem>>, %arg5: memref<64x32xf32, #tpu.memory_space<vmem>>) attributes {dimension_semantics = [], scalar_prefetch = 0 : i64, scratch_operands = 0 : i64, tpu.core_type = #tpu.core_type<tc>} {
    %c0 = arith.constant 0 : index
    %c0_0 = arith.constant 0 : index
    %0 = vector.load %arg1[%c0, %c0_0] : memref<64x64xf32, #tpu.memory_space<vmem>>, vector<64x64xf32>
    %c0_1 = arith.constant 0 : index
    %c0_2 = arith.constant 0 : index
    %1 = vector.load %arg4[%c0_1, %c0_2] : memref<4x32xf32, #tpu.memory_space<vmem>>, vector<4x32xf32>
    %2 = vector.extract_strided_slice %1 {offsets = [0, 0], sizes = [1, 32], strides = [1, 1]} : vector<4x32xf32> to vector<1x32xf32>
    %3 = vector.extract_strided_slice %1 {offsets = [1, 0], sizes = [1, 32], strides = [1, 1]} : vector<4x32xf32> to vector<1x32xf32>
    %4 = vector.extract_strided_slice %1 {offsets = [2, 0], sizes = [1, 32], strides = [1, 1]} : vector<4x32xf32> to vector<1x32xf32>
    %5 = vector.extract_strided_slice %1 {offsets = [3, 0], sizes = [1, 32], strides = [1, 1]} : vector<4x32xf32> to vector<1x32xf32>
    %c0_3 = arith.constant 0 : index
    %c0_4 = arith.constant 0 : index
    %6 = vector.load %arg0[%c0_3, %c0_4] : memref<64x16xf32, #tpu.memory_space<vmem>>, vector<64x16xf32>
    %c0_5 = arith.constant 0 : index
    %c0_6 = arith.constant 0 : index
    %7 = vector.load %arg2[%c0_5, %c0_6] : memref<16x33xf32, #tpu.memory_space<vmem>>, vector<16x33xf32>
    %cst = arith.constant dense<0.000000e+00> : vector<64x33xf32>
    %8 = tpu.matmul %6, %7, %cst {dimension_numbers = #tpu.dot_dimension_numbers<[1], [0], [0], [1], [0, 0, 1, 1], [], []>} : vector<64x16xf32>, vector<16x33xf32>, vector<64x33xf32> -> vector<64x33xf32>
    %9 = vector.extract_strided_slice %8 {offsets = [0, 0], sizes = [64, 32], strides = [1, 1]} : vector<64x33xf32> to vector<64x32xf32>
    %10 = vector.extract_strided_slice %8 {offsets = [0, 32], sizes = [64, 1], strides = [1, 1]} : vector<64x33xf32> to vector<64x1xf32>
    %cst_7 = arith.constant dense<0.000000e+00> : vector<1x64xf32>
    %11 = tpu.matmul %2, %9, %cst_7 {dimension_numbers = #tpu.dot_dimension_numbers<[1], [1], [0], [0], [0, 0, 1, 0], [], []>} : vector<1x32xf32>, vector<64x32xf32>, vector<1x64xf32> -> vector<1x64xf32>
    %12 = vector.broadcast %10 : vector<64x1xf32> to vector<64x64xf32>
    %13 = vector.broadcast %11 : vector<1x64xf32> to vector<64x64xf32>
    %14 = arith.addf %12, %13 : vector<64x64xf32>
    %cst_8 = arith.constant 0.000000e+00 : f32
    %15 = vector.broadcast %cst_8 : f32 to vector<64x64xf32>
    %16 = arith.cmpf ogt, %14, %15 : vector<64x64xf32>
    %cst_9 = arith.constant 2.000000e-01 : f32
    %17 = vector.broadcast %cst_9 : f32 to vector<64x64xf32>
    %18 = arith.mulf %17, %14 : vector<64x64xf32>
    %19 = arith.select %16, %14, %18 : vector<64x64xi1>, vector<64x64xf32>
    %20 = arith.addf %19, %0 : vector<64x64xf32>
    %cst_10 = arith.constant dense<0xFF800000> : vector<64xf32>
    %21 = vector.multi_reduction <maximumf>, %20, %cst_10 [1] : vector<64x64xf32> to vector<64xf32>
    %22 = vector.shape_cast %21 : vector<64xf32> to vector<64x1xf32>
    %23 = vector.broadcast %22 : vector<64x1xf32> to vector<64x64xf32>
    %24 = arith.subf %20, %23 : vector<64x64xf32>
    %25 = math.exp %24 : vector<64x64xf32>
    %cst_11 = arith.constant dense<0.000000e+00> : vector<64xf32>
    %26 = vector.multi_reduction <add>, %25, %cst_11 [1] : vector<64x64xf32> to vector<64xf32>
    %27 = vector.shape_cast %26 : vector<64xf32> to vector<64x1xf32>
    %cst_12 = arith.constant dense<0.000000e+00> : vector<64x32xf32>
    %28 = tpu.matmul %25, %9, %cst_12 {dimension_numbers = #tpu.dot_dimension_numbers<[1], [0], [0], [1], [0, 0, 1, 1], [], []>} : vector<64x64xf32>, vector<64x32xf32>, vector<64x32xf32> -> vector<64x32xf32>
    %29 = tpu.reciprocal %27 : vector<64x1xf32> -> vector<64x1xf32>
    %30 = vector.broadcast %29 : vector<64x1xf32> to vector<64x32xf32>
    %31 = arith.mulf %28, %30 : vector<64x32xf32>
    %32 = vector.broadcast %3 : vector<1x32xf32> to vector<64x32xf32>
    %33 = arith.addf %31, %32 : vector<64x32xf32>
    %cst_13 = arith.constant 0.000000e+00 : f32
    %34 = vector.broadcast %cst_13 : f32 to vector<64x32xf32>
    %35 = arith.maximumf %33, %34 : vector<64x32xf32>
    %c0_14 = arith.constant 0 : index
    %c0_15 = arith.constant 0 : index
    %36 = vector.load %arg3[%c0_14, %c0_15] : memref<32x33xf32, #tpu.memory_space<vmem>>, vector<32x33xf32>
    %cst_16 = arith.constant dense<0.000000e+00> : vector<64x33xf32>
    %37 = tpu.matmul %35, %36, %cst_16 {dimension_numbers = #tpu.dot_dimension_numbers<[1], [0], [0], [1], [0, 0, 1, 1], [], []>} : vector<64x32xf32>, vector<32x33xf32>, vector<64x33xf32> -> vector<64x33xf32>
    %38 = vector.extract_strided_slice %37 {offsets = [0, 0], sizes = [64, 32], strides = [1, 1]} : vector<64x33xf32> to vector<64x32xf32>
    %39 = vector.extract_strided_slice %37 {offsets = [0, 32], sizes = [64, 1], strides = [1, 1]} : vector<64x33xf32> to vector<64x1xf32>
    %cst_17 = arith.constant dense<0.000000e+00> : vector<1x64xf32>
    %40 = tpu.matmul %4, %38, %cst_17 {dimension_numbers = #tpu.dot_dimension_numbers<[1], [1], [0], [0], [0, 0, 1, 0], [], []>} : vector<1x32xf32>, vector<64x32xf32>, vector<1x64xf32> -> vector<1x64xf32>
    %41 = vector.broadcast %39 : vector<64x1xf32> to vector<64x64xf32>
    %42 = vector.broadcast %40 : vector<1x64xf32> to vector<64x64xf32>
    %43 = arith.addf %41, %42 : vector<64x64xf32>
    %cst_18 = arith.constant 0.000000e+00 : f32
    %44 = vector.broadcast %cst_18 : f32 to vector<64x64xf32>
    %45 = arith.cmpf ogt, %43, %44 : vector<64x64xf32>
    %cst_19 = arith.constant 2.000000e-01 : f32
    %46 = vector.broadcast %cst_19 : f32 to vector<64x64xf32>
    %47 = arith.mulf %46, %43 : vector<64x64xf32>
    %48 = arith.select %45, %43, %47 : vector<64x64xi1>, vector<64x64xf32>
    %49 = arith.addf %48, %0 : vector<64x64xf32>
    %cst_20 = arith.constant dense<0xFF800000> : vector<64xf32>
    %50 = vector.multi_reduction <maximumf>, %49, %cst_20 [1] : vector<64x64xf32> to vector<64xf32>
    %51 = vector.shape_cast %50 : vector<64xf32> to vector<64x1xf32>
    %52 = vector.broadcast %51 : vector<64x1xf32> to vector<64x64xf32>
    %53 = arith.subf %49, %52 : vector<64x64xf32>
    %54 = math.exp %53 : vector<64x64xf32>
    %cst_21 = arith.constant dense<0.000000e+00> : vector<64xf32>
    %55 = vector.multi_reduction <add>, %54, %cst_21 [1] : vector<64x64xf32> to vector<64xf32>
    %56 = vector.shape_cast %55 : vector<64xf32> to vector<64x1xf32>
    %cst_22 = arith.constant dense<0.000000e+00> : vector<64x32xf32>
    %57 = tpu.matmul %54, %38, %cst_22 {dimension_numbers = #tpu.dot_dimension_numbers<[1], [0], [0], [1], [0, 0, 1, 1], [], []>} : vector<64x64xf32>, vector<64x32xf32>, vector<64x32xf32> -> vector<64x32xf32>
    %58 = tpu.reciprocal %56 : vector<64x1xf32> -> vector<64x1xf32>
    %59 = vector.broadcast %58 : vector<64x1xf32> to vector<64x32xf32>
    %60 = arith.mulf %57, %59 : vector<64x32xf32>
    %61 = vector.broadcast %5 : vector<1x32xf32> to vector<64x32xf32>
    %62 = arith.addf %60, %61 : vector<64x32xf32>
    %c0_23 = arith.constant 0 : index
    %c0_24 = arith.constant 0 : index
    %63 = vector.load %arg5[%c0_23, %c0_24] : memref<64x32xf32, #tpu.memory_space<vmem>>, vector<64x32xf32>
    tpu.vector_store %arg5[%c0_23, %c0_24], %62 {strides = array<i32>} : memref<64x32xf32, #tpu.memory_space<vmem>>, vector<64x32xf32>,
    return
  }
}

</mosaic_0001>

<llo_original>
// kernel: gat_forward.1
$region0: #{gat_forward.1}
  #allocation0 [shape = 'u32[]', space=smem, size = 0x4, offset = 0x4, fixed_abs, tag = 'smem constant byte address 0x4 - core index']
  #allocation1 [shape = 'u32[144,128]{1,0:T(1,128)}', space=vmem, size = 0x12000, scoped, tag = 'internal scratch']
  %s0 = inlined_call_operand.vmem [shape: f32[64,16], index: 0, kind: input, shape index: {}]
  %s1 = inlined_call_operand.vmem [shape: f32[64,64], index: 1, kind: input, shape index: {}]
  %s2 = inlined_call_operand.vmem [shape: f32[16,33], index: 2, kind: input, shape index: {}]
  %s3 = inlined_call_operand.vmem [shape: f32[32,33], index: 3, kind: input, shape index: {}]
  %s4 = inlined_call_operand.vmem [shape: f32[4,32], index: 4, kind: input, shape index: {}]
  %s5 = inlined_call_operand.vmem [shape: f32[64,32], index: 5, kind: output, shape index: {}]
  %s6 = sld [smem:[#allocation0]]
  $region30: #{gat_forward.1} parent=0
    _
  %s8 = ssub.s32 1, %s6
  %s9 = scalar_select 0, %s8, %s6
  // Predicated region
  $region2: #{gat_forward.1} parent=0 // pred_check
    _
  $region3: #{gat_forward.1} parent=0 // pred_check_branch
    %11 = sbr.rel (0) target = $region5
  $region4: #{gat_forward.1} parent=0 // pred_region
    _
  $region5: #{gat_forward.1} parent=0 // pred_fallthru
    _
  // Predicated region
  $region6: #{gat_forward.1} parent=0 // pred_check
    _
  $region7: #{gat_forward.1} parent=0 // pred_check_branch
    %13 = sbr.rel (0) target = $region9
  $region8: #{gat_forward.1} parent=0 // pred_region
    _
  $region9: #{gat_forward.1} parent=0 // pred_fallthru
    _
  // Predicated region
  $region10: #{gat_forward.1} parent=0 // pred_check
    _
  $region11: #{gat_forward.1} parent=0 // pred_check_branch
    %15 = sbr.rel (0) target = $region13
  $region12: #{gat_forward.1} parent=0 // pred_region
    _
  $region13: #{gat_forward.1} parent=0 // pred_fallthru
    _
  // Predicated region
  $region14: #{gat_forward.1} parent=0 // pred_check
    _
  $region15: #{gat_forward.1} parent=0 // pred_check_branch
    %17 = sbr.rel (0) target = $region17
  $region16: #{gat_forward.1} parent=0 // pred_region
    _
  $region17: #{gat_forward.1} parent=0 // pred_fallthru
    _
  // Predicated region
  $region18: #{gat_forward.1} parent=0 // pred_check
    _
  $region19: #{gat_forward.1} parent=0 // pred_check_branch
    %19 = sbr.rel (0) target = $region21
  $region20: #{gat_forward.1} parent=0 // pred_region
    _
  $region21: #{gat_forward.1} parent=0 // pred_fallthru
    _
  %v20 = vld [vmem:[%s1] sm:$0xff]
  %v21 = vld [vmem:[%s1 + $0x8] sm:$0xff]
  %v22 = vld [vmem:[%s1 + $0x10] sm:$0xff]
  %v23 = vld [vmem:[%s1 + $0x18] sm:$0xff]
  %v24 = vld [vmem:[%s1 + $0x20] sm:$0xff]
  %v25 = vld [vmem:[%s1 + $0x28] sm:$0xff]
  %v26 = vld [vmem:[%s1 + $0x30] sm:$0xff]
  %v27 = vld [vmem:[%s1 + $0x38] sm:$0xff]
  %v28 = vld [vmem:[%s4] sm:$0xf]
  %v29 = vld [vmem:[%s0] sm:$0xff]
  %v30 = vld [vmem:[%s0 + $0x8] sm:$0xff]
  %v31 = vld [vmem:[%s0 + $0x10] sm:$0xff]
  %v32 = vld [vmem:[%s0 + $0x18] sm:$0xff]
  %v33 = vld [vmem:[%s0 + $0x20] sm:$0xff]
  %v34 = vld [vmem:[%s0 + $0x28] sm:$0xff]
  %v35 = vld [vmem:[%s0 + $0x30] sm:$0xff]
  %v36 = vld [vmem:[%s0 + $0x38] sm:$0xff]
  %v37 = vld [vmem:[%s2] sm:$0xff]
  %v38 = vld [vmem:[%s2 + $0x8] sm:$0xff]
  %vm39 = vcmask 130048
  %v41 = vsel %vm39, %v29, 0
  %v44 = vsel %vm39, %v30, 0
  %v47 = vsel %vm39, %v31, 0
  %v50 = vsel %vm39, %v32, 0
  %v53 = vsel %vm39, %v33, 0
  %v56 = vsel %vm39, %v34, 0
  %v59 = vsel %vm39, %v35, 0
  %v62 = vsel %vm39, %v36, 0
  %64 = vmatprep.subr.mxu0 0.0
  %65 = vmatpush1.msra.mxu0 %v37
  %66 = vmatprep.subr.mxu0 0.0
  %67 = vmatpush1.msra.mxu0 %v38
  %68 = vmatprep.subr.mxu0 0.0
  %69 = vmatpush1.msra.mxu0 0.0
  %70 = vmatprep.subr.mxu0 0.0
  %71 = vmatpush1.msra.mxu0 0.0
  %72 = vmatprep.subr.mxu0 0.0
  %73 = vmatpush1.msra.mxu0 0.0
  %74 = vmatprep.subr.mxu0 0.0
  %75 = vmatpush1.msra.mxu0 0.0
  %76 = vmatprep.subr.mxu0 0.0
  %77 = vmatpush1.msra.mxu0 0.0
  %78 = vmatprep.subr.mxu0 0.0
  %79 = vmatpush1.msra.mxu0 0.0
  %80 = vmatprep.subr.mxu0 0.0
  %81 = vmatpush1.msra.mxu0 0.0
  %82 = vmatprep.subr.mxu0 0.0
  %83 = vmatpush1.msra.mxu0 0.0
  %84 = vmatprep.subr.mxu0 0.0
  %85 = vmatpush1.msra.mxu0 0.0
  %86 = vmatprep.subr.mxu0 0.0
  %87 = vmatpush1.msra.mxu0 0.0
  %88 = vmatprep.subr.mxu0 0.0
  %89 = vmatpush1.msra.mxu0 0.0
  %90 = vmatprep.subr.mxu0 0.0
  %91 = vmatpush1.msra.mxu0 0.0
  %92 = vmatprep.subr.mxu0 0.0
  %93 = vmatpush1.msra.mxu0 0.0
  %94 = vmatprep.subr.mxu0 0.0
  %95 = vmatpush1.msra.mxu0 0.0
  %96 = vmatprep.subr.mxu0 0.0
  %97 = vmatpush1.msra.mxu0 0.0
  %98 = vmatprep.subr.mxu0 0.0
  %99 = vmatpush1.msra.mxu0 0.0
  %100 = vmatprep.subr.mxu0 0.0
  %101 = vmatpush1.msra.mxu0 0.0
  %102 = vmatprep.subr.mxu0 0.0
  %103 = vmatpush1.msra.mxu0 0.0
  %104 = vmatprep.subr.mxu0 0.0
  %105 = vmatpush1.msra.mxu0 0.0
  %106 = vmatprep.subr.mxu0 0.0
  %107 = vmatpush1.msra.mxu0 0.0
  %108 = vmatprep.subr.mxu0 0.0
  %109 = vmatpush1.msra.mxu0 0.0
  %110 = vmatprep.subr.mxu0 0.0
  %111 = vmatpush1.msra.mxu0 0.0
  %112 = vmatprep.subr.mxu0 0.0
  %113 = vmatpush1.msra.mxu0 0.0
  %114 = vmatprep.subr.mxu0 0.0
  %115 = vmatpush1.msra.mxu0 0.0
  %116 = vmatprep.subr.mxu0 0.0
  %117 = vmatpush1.msra.mxu0 0.0
  %118 = vmatprep.subr.mxu0 0.0
  %119 = vmatpush1.msra.mxu0 0.0
  %120 = vmatprep.subr.mxu0 0.0
  %121 = vmatpush1.msra.mxu0 0.0
  %122 = vmatprep.subr.mxu0 0.0
  %123 = vmatpush1.msra.mxu0 0.0
  %124 = vmatprep.subr.mxu0 0.0
  %125 = vmatpush1.msra.mxu0 0.0
  %126 = vmatprep.subr.mxu0 0.0
  %127 = vmatpush1.msra.mxu0 0.0
  %128 = vmatprep.mubr.f32.mxu0 0.0
  %129 = vmatmul.mubr.f32.gmra.mrb[0].mxu0 %v41
  %v130 = vpop.f32.mrb[0].mxu0
  %v131 = vadd.f32 0.0, %v130
  %v132 = vpop.f32.mrb[0].mxu0
  %133 = vmatprep.mubr.f32.mxu0 0.0
  %134 = vmatmul.mubr.f32.gmra.mrb[0].mxu0 %v44
  %v135 = vpop.f32.mrb[0].mxu0
  %v136 = vadd.f32 0.0, %v135
  %v137 = vpop.f32.mrb[0].mxu0
  %138 = vmatprep.mubr.f32.mxu0 0.0
  %139 = vmatmul.mubr.f32.gmra.mrb[0].mxu0 %v47
  %v140 = vpop.f32.mrb[0].mxu0
  %v141 = vadd.f32 0.0, %v140
  %v142 = vpop.f32.mrb[0].mxu0
  %143 = vmatprep.mubr.f32.mxu0 0.0
  %144 = vmatmul.mubr.f32.gmra.mrb[0].mxu0 %v50
  %v145 = vpop.f32.mrb[0].mxu0
  %v146 = vadd.f32 0.0, %v145
  %v147 = vpop.f32.mrb[0].mxu0
  %148 = vmatprep.mubr.f32.mxu0 0.0
  %149 = vmatmul.mubr.f32.gmra.mrb[0].mxu0 %v53
  %v150 = vpop.f32.mrb[0].mxu0
  %v151 = vadd.f32 0.0, %v150
  %v152 = vpop.f32.mrb[0].mxu0
  %153 = vmatprep.mubr.f32.mxu0 0.0
  %154 = vmatmul.mubr.f32.gmra.mrb[0].mxu0 %v56
  %v155 = vpop.f32.mrb[0].mxu0
  %v156 = vadd.f32 0.0, %v155
  %v157 = vpop.f32.mrb[0].mxu0
  %158 = vmatprep.mubr.f32.mxu0 0.0
  %159 = vmatmul.mubr.f32.gmra.mrb[0].mxu0 %v59
  %v160 = vpop.f32.mrb[0].mxu0
  %v161 = vadd.f32 0.0, %v160
  %v162 = vpop.f32.mrb[0].mxu0
  %163 = vmatprep.mubr.f32.mxu0 0.0
  %164 = vmatmul.mubr.f32.gmra.mrb[0].mxu0 %v62
  %v165 = vpop.f32.mrb[0].mxu0
  %v166 = vadd.f32 0.0, %v165
  %v167 = vpop.f32.mrb[0].mxu0
  %168 = vdwg.mxu0
  %vm169 = vcmask 261120
  %v171 = vsel %vm169, %v28, 0
  %v174 = vsel %vm169, %v131, 0
  %v177 = vsel %vm169, %v136, 0
  %v180 = vsel %vm169, %v141, 0
  %v183 = vsel %vm169, %v146, 0
  %v186 = vsel %vm169, %v151, 0
  %v189 = vsel %vm169, %v156, 0
  %v192 = vsel %vm169, %v161, 0
  %v195 = vsel %vm169, %v166, 0
  %197 = vmatprep.subr.mxu0 0.0
  %198 = vmatpush1.xpose.msra.mxu0 %v174
  %199 = vmatprep.subr.mxu0 0.0
  %200 = vmatpush1.xpose.msra.mxu0 %v177
  %201 = vmatprep.subr.mxu0 0.0
  %202 = vmatpush1.xpose.msra.mxu0 %v180
  %203 = vmatprep.subr.mxu0 0.0
  %204 = vmatpush1.xpose.msra.mxu0 %v183
  %205 = vmatprep.subr.mxu0 0.0
  %206 = vmatpush1.xpose.msra.mxu0 %v186
  %207 = vmatprep.subr.mxu0 0.0
  %208 = vmatpush1.xpose.msra.mxu0 %v189
  %209 = vmatprep.subr.mxu0 0.0
  %210 = vmatpush1.xpose.msra.mxu0 %v192
  %211 = vmatprep.subr.mxu0 0.0
  %212 = vmatpush1.xpose.msra.mxu0 %v195
  %213 = vmatprep.subr.mxu0 0.0
  %214 = vmatpush1.xpose.msra.mxu0 0.0
  %215 = vmatprep.subr.mxu0 0.0
  %216 = vmatpush1.xpose.msra.mxu0 0.0
  %217 = vmatprep.subr.mxu0 0.0
  %218 = vmatpush1.xpose.msra.mxu0 0.0
  %219 = vmatprep.subr.mxu0 0.0
  %220 = vmatpush1.xpose.msra.mxu0 0.0
  %221 = vmatprep.subr.mxu0 0.0
  %222 = vmatpush1.xpose.msra.mxu0 0.0
  %223 = vmatprep.subr.mxu0 0.0
  %224 = vmatpush1.xpose.msra.mxu0 0.0
  %225 = vmatprep.subr.mxu0 0.0
  %226 = vmatpush1.xpose.msra.mxu0 0.0
  %227 = vmatprep.subr.mxu0 0.0
  %228 = vmatpush1.xpose.msra.mxu0 0.0
  %229 = vmatprep.subr.mxu0 0.0
  %230 = vmatpush1.xpose.msra.mxu0 0.0
  %231 = vmatprep.subr.mxu0 0.0
  %232 = vmatpush1.xpose.msra.mxu0 0.0
  %233 = vmatprep.subr.mxu0 0.0
  %234 = vmatpush1.xpose.msra.mxu0 0.0
  %235 = vmatprep.subr.mxu0 0.0
  %236 = vmatpush1.xpose.msra.mxu0 0.0
  %237 = vmatprep.subr.mxu0 0.0
  %238 = vmatpush1.xpose.msra.mxu0 0.0
  %239 = vmatprep.subr.mxu0 0.0
  %240 = vmatpush1.xpose.msra.mxu0 0.0
  %241 = vmatprep.subr.mxu0 0.0
  %242 = vmatpush1.xpose.msra.mxu0 0.0
  %243 = vmatprep.subr.mxu0 0.0
  %244 = vmatpush1.xpose.msra.mxu0 0.0
  %245 = vmatprep.subr.mxu0 0.0
  %246 = vmatpush1.xpose.msra.mxu0 0.0
  %247 = vmatprep.subr.mxu0 0.0
  %248 = vmatpush1.xpose.msra.mxu0 0.0
  %249 = vmatprep.subr.mxu0 0.0
  %250 = vmatpush1.xpose.msra.mxu0 0.0
  %251 = vmatprep.subr.mxu0 0.0
  %252 = vmatpush1.xpose.msra.mxu0 0.0
  %253 = vmatprep.subr.mxu0 0.0
  %254 = vmatpush1.xpose.msra.mxu0 0.0
  %255 = vmatprep.subr.mxu0 0.0
  %256 = vmatpush1.xpose.msra.mxu0 0.0
  %257 = vmatprep.subr.mxu0 0.0
  %258 = vmatpush1.xpose.msra.mxu0 0.0
  %259 = vmatprep.subr.mxu0 0.0
  %260 = vmatpush1.xpose.msra.mxu0 0.0
  %261 = vmatprep.mubr.f32.mxu0 0.0
  %262 = vmatmul.mubr.f32.gmra.mrb[0].mxu0 %v171
  %v263 = vpop.f32.mrb[0].mxu0
  %v264 = vadd.f32 0.0, %v263
  %v265 = vpop.f32.mrb[0].mxu0
  %266 = vdwg.mxu0
  %267 = vset.pattern.permute.xlu0 32
  %268 = vperm.xlu0 %267, %v131
  %v269 = vpop.permute.xlu0 %268
  %271 = vset.pattern.permute.xlu0 32
  %272 = vperm.xlu0 %271, %v136
  %v273 = vpop.permute.xlu0 %272
  %275 = vset.pattern.permute.xlu0 32
  %276 = vperm.xlu0 %275, %v141
  %v277 = vpop.permute.xlu0 %276
  %279 = vset.pattern.permute.xlu0 32
  %280 = vperm.xlu0 %279, %v146
  %v281 = vpop.permute.xlu0 %280
  %283 = vset.pattern.permute.xlu0 32
  %284 = vperm.xlu0 %283, %v151
  %v285 = vpop.permute.xlu0 %284
  %287 = vset.pattern.permute.xlu0 32
  %288 = vperm.xlu0 %287, %v156
  %v289 = vpop.permute.xlu0 %288
  %291 = vset.pattern.permute.xlu0 32
  %292 = vperm.xlu0 %291, %v161
  %v293 = vpop.permute.xlu0 %292
  %295 = vset.pattern.permute.xlu0 32
  %296 = vperm.xlu0 %295, %v166
  %v297 = vpop.permute.xlu0 %296
  %v299 = vlaneseq
  %v300 = vshrl.u32 %v299, 7
  %v301 = vsub.s32 0, %v300
  %v302 = vrot.slane %v264, %v301
  %v303 = vadd.f32 %v269, %v302
  %v304 = vadd.f32 %v273, %v302
  %v305 = vadd.f32 %v277, %v302
  %v306 = vadd.f32 %v281, %v302
  %v307 = vadd.f32 %v285, %v302
  %v308 = vadd.f32 %v289, %v302
  %v309 = vadd.f32 %v293, %v302
  %v310 = vadd.f32 %v297, %v302
  %vm311 = vcmp.gt.f32.partialorder %v303, 0.0
  %vm312 = vcmp.gt.f32.partialorder %v304, 0.0
  %vm313 = vcmp.gt.f32.partialorder %v305, 0.0
  %vm314 = vcmp.gt.f32.partialorder %v306, 0.0
  %vm315 = vcmp.gt.f32.partialorder %v307, 0.0
  %vm316 = vcmp.gt.f32.partialorder %v308, 0.0
  %vm317 = vcmp.gt.f32.partialorder %v309, 0.0
  %vm318 = vcmp.gt.f32.partialorder %v310, 0.0
  %v319 = vmul.f32 %v303, 0.2
  %v320 = vmul.f32 %v304, 0.2
  %v321 = vmul.f32 %v305, 0.2
  %v322 = vmul.f32 %v306, 0.2
  %v323 = vmul.f32 %v307, 0.2
  %v324 = vmul.f32 %v308, 0.2
  %v325 = vmul.f32 %v309, 0.2
  %v326 = vmul.f32 %v310, 0.2
  %v327 = vsel %vm311, %v303, %v319
  %v328 = vsel %vm312, %v304, %v320
  %v329 = vsel %vm313, %v305, %v321
  %v330 = vsel %vm314, %v306, %v322
  %v331 = vsel %vm315, %v307, %v323
  %v332 = vsel %vm316, %v308, %v324
  %v333 = vsel %vm317, %v309, %v325
  %v334 = vsel %vm318, %v310, %v326
  %v335 = vadd.f32 %v327, %v20
  %v336 = vadd.f32 %v328, %v21
  %v337 = vadd.f32 %v329, %v22
  %v338 = vadd.f32 %v330, %v23
  %v339 = vadd.f32 %v331, %v24
  %v340 = vadd.f32 %v332, %v25
  %v341 = vadd.f32 %v333, %v26
  %v342 = vadd.f32 %v334, %v27
  %vm343 = vcmask 523264
  %v344 = vsel %vm343, %v335, -inf
  %345 = vmax.xlane.f32.xlu0 %v344
  %v346 = vpop.xlane.xlu0 %345
  %v347 = vsel %vm343, %v336, -inf
  %348 = vmax.xlane.f32.xlu0 %v347
  %v349 = vpop.xlane.xlu0 %348
  %v350 = vsel %vm343, %v337, -inf
  %351 = vmax.xlane.f32.xlu0 %v350
  %v352 = vpop.xlane.xlu0 %351
  %v353 = vsel %vm343, %v338, -inf
  %354 = vmax.xlane.f32.xlu0 %v353
  %v355 = vpop.xlane.xlu0 %354
  %v356 = vsel %vm343, %v339, -inf
  %357 = vmax.xlane.f32.xlu0 %v356
  %v358 = vpop.xlane.xlu0 %357
  %v359 = vsel %vm343, %v340, -inf
  %360 = vmax.xlane.f32.xlu0 %v359
  %v361 = vpop.xlane.xlu0 %360
  %v362 = vsel %vm343, %v341, -inf
  %363 = vmax.xlane.f32.xlu0 %v362
  %v364 = vpop.xlane.xlu0 %363
  %v365 = vsel %vm343, %v342, -inf
  %366 = vmax.xlane.f32.xlu0 %v365
  %v367 = vpop.xlane.xlu0 %366
  %v368 = vsub.f32 %v335, %v346
  %v369 = vsub.f32 %v336, %v349
  %v370 = vsub.f32 %v337, %v352
  %v371 = vsub.f32 %v338, %v355
  %v372 = vsub.f32 %v339, %v358
  %v373 = vsub.f32 %v340, %v361
  %v374 = vsub.f32 %v341, %v364
  %v375 = vsub.f32 %v342, %v367
  %v376 = vmul.f32 %v368, 1.442695
  %v377 = vpow.pop %v376
  %v378 = vmul.f32 %v369, 1.442695
  %v379 = vpow.pop %v378
  %v380 = vmul.f32 %v370, 1.442695
  %v381 = vpow.pop %v380
  %v382 = vmul.f32 %v371, 1.442695
  %v383 = vpow.pop %v382
  %v384 = vmul.f32 %v372, 1.442695
  %v385 = vpow.pop %v384
  %v386 = vmul.f32 %v373, 1.442695
  %v387 = vpow.pop %v386
  %v388 = vmul.f32 %v374, 1.442695
  %v389 = vpow.pop %v388
  %v390 = vmul.f32 %v375, 1.442695
  %v391 = vpow.pop %v390
  %v392 = vsel %vm343, %v377, 0.0
  %393 = vadd.xlane.f32.xlu0 %v392
  %v394 = vpop.xlane.xlu0 %393
  %v395 = vsel %vm343, %v379, 0.0
  %396 = vadd.xlane.f32.xlu0 %v395
  %v397 = vpop.xlane.xlu0 %396
  %v398 = vsel %vm343, %v381, 0.0
  %399 = vadd.xlane.f32.xlu0 %v398
  %v400 = vpop.xlane.xlu0 %399
  %v401 = vsel %vm343, %v383, 0.0
  %402 = vadd.xlane.f32.xlu0 %v401
  %v403 = vpop.xlane.xlu0 %402
  %v404 = vsel %vm343, %v385, 0.0
  %405 = vadd.xlane.f32.xlu0 %v404
  %v406 = vpop.xlane.xlu0 %405
  %v407 = vsel %vm343, %v387, 0.0
  %408 = vadd.xlane.f32.xlu0 %v407
  %v409 = vpop.xlane.xlu0 %408
  %v410 = vsel %vm343, %v389, 0.0
  %411 = vadd.xlane.f32.xlu0 %v410
  %v412 = vpop.xlane.xlu0 %411
  %v413 = vsel %vm343, %v391, 0.0
  %414 = vadd.xlane.f32.xlu0 %v413
  %v415 = vpop.xlane.xlu0 %414
  %v417 = vsel %vm343, %v377, 0
  %v420 = vsel %vm343, %v379, 0
  %v423 = vsel %vm343, %v381, 0
  %v426 = vsel %vm343, %v383, 0
  %v429 = vsel %vm343, %v385, 0
  %v432 = vsel %vm343, %v387, 0
  %v435 = vsel %vm343, %v389, 0
  %v438 = vsel %vm343, %v391, 0
  %440 = vmatprep.subr.mxu0 0.0
  %441 = vmatpush1.msra.mxu0 %v131
  %442 = vmatprep.subr.mxu0 0.0
  %443 = vmatpush1.msra.mxu0 %v136
  %444 = vmatprep.subr.mxu0 0.0
  %445 = vmatpush1.msra.mxu0 %v141
  %446 = vmatprep.subr.mxu0 0.0
  %447 = vmatpush1.msra.mxu0 %v146
  %448 = vmatprep.subr.mxu0 0.0
  %449 = vmatpush1.msra.mxu0 %v151
  %450 = vmatprep.subr.mxu0 0.0
  %451 = vmatpush1.msra.mxu0 %v156
  %452 = vmatprep.subr.mxu0 0.0
  %453 = vmatpush1.msra.mxu0 %v161
  %454 = vmatprep.subr.mxu0 0.0
  %455 = vmatpush1.msra.mxu0 %v166
  %456 = vmatprep.subr.mxu0 0.0
  %457 = vmatpush1.msra.mxu0 0.0
  %458 = vmatprep.subr.mxu0 0.0
  %459 = vmatpush1.msra.mxu0 0.0
  %460 = vmatprep.subr.mxu0 0.0
  %461 = vmatpush1.msra.mxu0 0.0
  %462 = vmatprep.subr.mxu0 0.0
  %463 = vmatpush1.msra.mxu0 0.0
  %464 = vmatprep.subr.mxu0 0.0
  %465 = vmatpush1.msra.mxu0 0.0
  %466 = vmatprep.subr.mxu0 0.0
  %467 = vmatpush1.msra.mxu0 0.0
  %468 = vmatprep.subr.mxu0 0.0
  %469 = vmatpush1.msra.mxu0 0.0
  %470 = vmatprep.subr.mxu0 0.0
  %471 = vmatpush1.msra.mxu0 0.0
  %472 = vmatprep.subr.mxu0 0.0
  %473 = vmatpush1.msra.mxu0 0.0
  %474 = vmatprep.subr.mxu0 0.0
  %475 = vmatpush1.msra.mxu0 0.0
  %476 = vmatprep.subr.mxu0 0.0
  %477 = vmatpush1.msra.mxu0 0.0
  %478 = vmatprep.subr.mxu0 0.0
  %479 = vmatpush1.msra.mxu0 0.0
  %480 = vmatprep.subr.mxu0 0.0
  %481 = vmatpush1.msra.mxu0 0.0
  %482 = vmatprep.subr.mxu0 0.0
  %483 = vmatpush1.msra.mxu0 0.0
  %484 = vmatprep.subr.mxu0 0.0
  %485 = vmatpush1.msra.mxu0 0.0
  %486 = vmatprep.subr.mxu0 0.0
  %487 = vmatpush1.msra.mxu0 0.0
  %488 = vmatprep.subr.mxu0 0.0
  %489 = vmatpush1.msra.mxu0 0.0
  %490 = vmatprep.subr.mxu0 0.0
  %491 = vmatpush1.msra.mxu0 0.0
  %492 = vmatprep.subr.mxu0 0.0
  %493 = vmatpush1.msra.mxu0 0.0
  %494 = vmatprep.subr.mxu0 0.0
  %495 = vmatpush1.msra.mxu0 0.0
  %496 = vmatprep.subr.mxu0 0.0
  %497 = vmatpush1.msra.mxu0 0.0
  %498 = vmatprep.subr.mxu0 0.0
  %499 = vmatpush1.msra.mxu0 0.0
  %500 = vmatprep.subr.mxu0 0.0
  %501 = vmatpush1.msra.mxu0 0.0
  %502 = vmatprep.subr.mxu0 0.0
  %503 = vmatpush1.msra.mxu0 0.0
  %504 = vmatprep.mubr.f32.mxu0 0.0
  %505 = vmatmul.mubr.f32.gmra.mrb[0].mxu0 %v417
  %v506 = vpop.f32.mrb[0].mxu0
  %v507 = vadd.f32 0.0, %v506
  %v508 = vpop.f32.mrb[0].mxu0
  %509 = vmatprep.mubr.f32.mxu0 0.0
  %510 = vmatmul.mubr.f32.gmra.mrb[0].mxu0 %v420
  %v511 = vpop.f32.mrb[0].mxu0
  %v512 = vadd.f32 0.0, %v511
  %v513 = vpop.f32.mrb[0].mxu0
  %514 = vmatprep.mubr.f32.mxu0 0.0
  %515 = vmatmul.mubr.f32.gmra.mrb[0].mxu0 %v423
  %v516 = vpop.f32.mrb[0].mxu0
  %v517 = vadd.f32 0.0, %v516
  %v518 = vpop.f32.mrb[0].mxu0
  %519 = vmatprep.mubr.f32.mxu0 0.0
  %520 = vmatmul.mubr.f32.gmra.mrb[0].mxu0 %v426
  %v521 = vpop.f32.mrb[0].mxu0
  %v522 = vadd.f32 0.0, %v521
  %v523 = vpop.f32.mrb[0].mxu0
  %524 = vmatprep.mubr.f32.mxu0 0.0
  %525 = vmatmul.mubr.f32.gmra.mrb[0].mxu0 %v429
  %v526 = vpop.f32.mrb[0].mxu0
  %v527 = vadd.f32 0.0, %v526
  %v528 = vpop.f32.mrb[0].mxu0
  %529 = vmatprep.mubr.f32.mxu0 0.0
  %530 = vmatmul.mubr.f32.gmra.mrb[0].mxu0 %v432
  %v531 = vpop.f32.mrb[0].mxu0
  %v532 = vadd.f32 0.0, %v531
  %v533 = vpop.f32.mrb[0].mxu0
  %534 = vmatprep.mubr.f32.mxu0 0.0
  %535 = vmatmul.mubr.f32.gmra.mrb[0].mxu0 %v435
  %v536 = vpop.f32.mrb[0].mxu0
  %v537 = vadd.f32 0.0, %v536
  %v538 = vpop.f32.mrb[0].mxu0
  %539 = vmatprep.mubr.f32.mxu0 0.0
  %540 = vmatmul.mubr.f32.gmra.mrb[0].mxu0 %v438
  %v541 = vpop.f32.mrb[0].mxu0
  %v542 = vadd.f32 0.0, %v541
  %v543 = vpop.f32.mrb[0].mxu0
  %544 = vdwg.mxu0
  %v545 = vrcp.pop %v394
  %v546 = vrcp.pop %v397
  %v547 = vrcp.pop %v400
  %v548 = vrcp.pop %v403
  %v549 = vrcp.pop %v406
  %v550 = vrcp.pop %v409
  %v551 = vrcp.pop %v412
  %v552 = vrcp.pop %v415
  %v553 = vmul.f32 %v507, %v545
  %v554 = vmul.f32 %v512, %v546
  %v555 = vmul.f32 %v517, %v547
  %v556 = vmul.f32 %v522, %v548
  %v557 = vmul.f32 %v527, %v549
  %v558 = vmul.f32 %v532, %v550
  %v559 = vmul.f32 %v537, %v551
  %v560 = vmul.f32 %v542, %v552
  %v561 = vlaneseq
  %v562 = vshrl.u32 %v561, 7
  %v563 = vsub.s32 1, %v562
  %v564 = vrot.slane %v28, %v563
  %v565 = vadd.f32 %v553, %v564
  %v566 = vadd.f32 %v554, %v564
  %v567 = vadd.f32 %v555, %v564
  %v568 = vadd.f32 %v556, %v564
  %v569 = vadd.f32 %v557, %v564
  %v570 = vadd.f32 %v558, %v564
  %v571 = vadd.f32 %v559, %v564
  %v572 = vadd.f32 %v560, %v564
  %v573 = vmax.f32 %v565, 0.0
  %v574 = vmax.f32 %v566, 0.0
  %v575 = vmax.f32 %v567, 0.0
  %v576 = vmax.f32 %v568, 0.0
  %v577 = vmax.f32 %v569, 0.0
  %v578 = vmax.f32 %v570, 0.0
  %v579 = vmax.f32 %v571, 0.0
  %v580 = vmax.f32 %v572, 0.0
  %v581 = vld [vmem:[%s3] sm:$0xff]
  %v582 = vld [vmem:[%s3 + $0x8] sm:$0xff]
  %v583 = vld [vmem:[%s3 + $0x10] sm:$0xff]
  %v584 = vld [vmem:[%s3 + $0x18] sm:$0xff]
  %v586 = vsel %vm169, %v573, 0
  %v589 = vsel %vm169, %v574, 0
  %v592 = vsel %vm169, %v575, 0
  %v595 = vsel %vm169, %v576, 0
  %v598 = vsel %vm169, %v577, 0
  %v601 = vsel %vm169, %v578, 0
  %v604 = vsel %vm169, %v579, 0
  %v607 = vsel %vm169, %v580, 0
  %609 = vmatprep.subr.mxu0 0.0
  %610 = vmatpush1.msra.mxu0 %v581
  %611 = vmatprep.subr.mxu0 0.0
  %612 = vmatpush1.msra.mxu0 %v582
  %613 = vmatprep.subr.mxu0 0.0
  %614 = vmatpush1.msra.mxu0 %v583
  %615 = vmatprep.subr.mxu0 0.0
  %616 = vmatpush1.msra.mxu0 %v584
  %617 = vmatprep.subr.mxu0 0.0
  %618 = vmatpush1.msra.mxu0 0.0
  %619 = vmatprep.subr.mxu0 0.0
  %620 = vmatpush1.msra.mxu0 0.0
  %621 = vmatprep.subr.mxu0 0.0
  %622 = vmatpush1.msra.mxu0 0.0
  %623 = vmatprep.subr.mxu0 0.0
  %624 = vmatpush1.msra.mxu0 0.0
  %625 = vmatprep.subr.mxu0 0.0
  %626 = vmatpush1.msra.mxu0 0.0
  %627 = vmatprep.subr.mxu0 0.0
  %628 = vmatpush1.msra.mxu0 0.0
  %629 = vmatprep.subr.mxu0 0.0
  %630 = vmatpush1.msra.mxu0 0.0
  %631 = vmatprep.subr.mxu0 0.0
  %632 = vmatpush1.msra.mxu0 0.0
  %633 = vmatprep.subr.mxu0 0.0
  %634 = vmatpush1.msra.mxu0 0.0
  %635 = vmatprep.subr.mxu0 0.0
  %636 = vmatpush1.msra.mxu0 0.0
  %637 = vmatprep.subr.mxu0 0.0
  %638 = vmatpush1.msra.mxu0 0.0
  %639 = vmatprep.subr.mxu0 0.0
  %640 = vmatpush1.msra.mxu0 0.0
  %641 = vmatprep.subr.mxu0 0.0
  %642 = vmatpush1.msra.mxu0 0.0
  %643 = vmatprep.subr.mxu0 0.0
  %644 = vmatpush1.msra.mxu0 0.0
  %645 = vmatprep.subr.mxu0 0.0
  %646 = vmatpush1.msra.mxu0 0.0
  %647 = vmatprep.subr.mxu0 0.0
  %648 = vmatpush1.msra.mxu0 0.0
  %649 = vmatprep.subr.mxu0 0.0
  %650 = vmatpush1.msra.mxu0 0.0
  %651 = vmatprep.subr.mxu0 0.0
  %652 = vmatpush1.msra.mxu0 0.0
  %653 = vmatprep.subr.mxu0 0.0
  %654 = vmatpush1.msra.mxu0 0.0
  %655 = vmatprep.subr.mxu0 0.0
  %656 = vmatpush1.msra.mxu0 0.0
  %657 = vmatprep.subr.mxu0 0.0
  %658 = vmatpush1.msra.mxu0 0.0
  %659 = vmatprep.subr.mxu0 0.0
  %660 = vmatpush1.msra.mxu0 0.0
  %661 = vmatprep.subr.mxu0 0.0
  %662 = vmatpush1.msra.mxu0 0.0
  %663 = vmatprep.subr.mxu0 0.0
  %664 = vmatpush1.msra.mxu0 0.0
  %665 = vmatprep.subr.mxu0 0.0
  %666 = vmatpush1.msra.mxu0 0.0
  %667 = vmatprep.subr.mxu0 0.0
  %668 = vmatpush1.msra.mxu0 0.0
  %669 = vmatprep.subr.mxu0 0.0
  %670 = vmatpush1.msra.mxu0 0.0
  %671 = vmatprep.subr.mxu0 0.0
  %672 = vmatpush1.msra.mxu0 0.0
  %673 = vmatprep.mubr.f32.mxu0 0.0
  %674 = vmatmul.mubr.f32.gmra.mrb[0].mxu0 %v586
  %v675 = vpop.f32.mrb[0].mxu0
  %v676 = vadd.f32 0.0, %v675
  %v677 = vpop.f32.mrb[0].mxu0
  %678 = vmatprep.mubr.f32.mxu0 0.0
  %679 = vmatmul.mubr.f32.gmra.mrb[0].mxu0 %v589
  %v680 = vpop.f32.mrb[0].mxu0
  %v681 = vadd.f32 0.0, %v680
  %v682 = vpop.f32.mrb[0].mxu0
  %683 = vmatprep.mubr.f32.mxu0 0.0
  %684 = vmatmul.mubr.f32.gmra.mrb[0].mxu0 %v592
  %v685 = vpop.f32.mrb[0].mxu0
  %v686 = vadd.f32 0.0, %v685
  %v687 = vpop.f32.mrb[0].mxu0
  %688 = vmatprep.mubr.f32.mxu0 0.0
  %689 = vmatmul.mubr.f32.gmra.mrb[0].mxu0 %v595
  %v690 = vpop.f32.mrb[0].mxu0
  %v691 = vadd.f32 0.0, %v690
  %v692 = vpop.f32.mrb[0].mxu0
  %693 = vmatprep.mubr.f32.mxu0 0.0
  %694 = vmatmul.mubr.f32.gmra.mrb[0].mxu0 %v598
  %v695 = vpop.f32.mrb[0].mxu0
  %v696 = vadd.f32 0.0, %v695
  %v697 = vpop.f32.mrb[0].mxu0
  %698 = vmatprep.mubr.f32.mxu0 0.0
  %699 = vmatmul.mubr.f32.gmra.mrb[0].mxu0 %v601
  %v700 = vpop.f32.mrb[0].mxu0
  %v701 = vadd.f32 0.0, %v700
  %v702 = vpop.f32.mrb[0].mxu0
  %703 = vmatprep.mubr.f32.mxu0 0.0
  %704 = vmatmul.mubr.f32.gmra.mrb[0].mxu0 %v604
  %v705 = vpop.f32.mrb[0].mxu0
  %v706 = vadd.f32 0.0, %v705
  %v707 = vpop.f32.mrb[0].mxu0
  %708 = vmatprep.mubr.f32.mxu0 0.0
  %709 = vmatmul.mubr.f32.gmra.mrb[0].mxu0 %v607
  %v710 = vpop.f32.mrb[0].mxu0
  %v711 = vadd.f32 0.0, %v710
  %v712 = vpop.f32.mrb[0].mxu0
  %713 = vdwg.mxu0
  %v714 = vrot.slane %v28, 2
  %v715 = vsel %vm169, %v714, 0
  %v718 = vsel %vm169, %v676, 0
  %v721 = vsel %vm169, %v681, 0
  %v724 = vsel %vm169, %v686, 0
  %v727 = vsel %vm169, %v691, 0
  %v730 = vsel %vm169, %v696, 0
  %v733 = vsel %vm169, %v701, 0
  %v736 = vsel %vm169, %v706, 0
  %v739 = vsel %vm169, %v711, 0
  %741 = vmatprep.subr.mxu0 0.0
  %742 = vmatpush1.xpose.msra.mxu0 %v718
  %743 = vmatprep.subr.mxu0 0.0
  %744 = vmatpush1.xpose.msra.mxu0 %v721
  %745 = vmatprep.subr.mxu0 0.0
  %746 = vmatpush1.xpose.msra.mxu0 %v724
  %747 = vmatprep.subr.mxu0 0.0
  %748 = vmatpush1.xpose.msra.mxu0 %v727
  %749 = vmatprep.subr.mxu0 0.0
  %750 = vmatpush1.xpose.msra.mxu0 %v730
  %751 = vmatprep.subr.mxu0 0.0
  %752 = vmatpush1.xpose.msra.mxu0 %v733
  %753 = vmatprep.subr.mxu0 0.0
  %754 = vmatpush1.xpose.msra.mxu0 %v736
  %755 = vmatprep.subr.mxu0 0.0
  %756 = vmatpush1.xpose.msra.mxu0 %v739
  %757 = vmatprep.subr.mxu0 0.0
  %758 = vmatpush1.xpose.msra.mxu0 0.0
  %759 = vmatprep.subr.mxu0 0.0
  %760 = vmatpush1.xpose.msra.mxu0 0.0
  %761 = vmatprep.subr.mxu0 0.0
  %762 = vmatpush1.xpose.msra.mxu0 0.0
  %763 = vmatprep.subr.mxu0 0.0
  %764 = vmatpush1.xpose.msra.mxu0 0.0
  %765 = vmatprep.subr.mxu0 0.0
  %766 = vmatpush1.xpose.msra.mxu0 0.0
  %767 = vmatprep.subr.mxu0 0.0
  %768 = vmatpush1.xpose.msra.mxu0 0.0
  %769 = vmatprep.subr.mxu0 0.0
  %770 = vmatpush1.xpose.msra.mxu0 0.0
  %771 = vmatprep.subr.mxu0 0.0
  %772 = vmatpush1.xpose.msra.mxu0 0.0
  %773 = vmatprep.subr.mxu0 0.0
  %774 = vmatpush1.xpose.msra.mxu0 0.0
  %775 = vmatprep.subr.mxu0 0.0
  %776 = vmatpush1.xpose.msra.mxu0 0.0
  %777 = vmatprep.subr.mxu0 0.0
  %778 = vmatpush1.xpose.msra.mxu0 0.0
  %779 = vmatprep.subr.mxu0 0.0
  %780 = vmatpush1.xpose.msra.mxu0 0.0
  %781 = vmatprep.subr.mxu0 0.0
  %782 = vmatpush1.xpose.msra.mxu0 0.0
  %783 = vmatprep.subr.mxu0 0.0
  %784 = vmatpush1.xpose.msra.mxu0 0.0
  %785 = vmatprep.subr.mxu0 0.0
  %786 = vmatpush1.xpose.msra.mxu0 0.0
  %787 = vmatprep.subr.mxu0 0.0
  %788 = vmatpush1.xpose.msra.mxu0 0.0
  %789 = vmatprep.subr.mxu0 0.0
  %790 = vmatpush1.xpose.msra.mxu0 0.0
  %791 = vmatprep.subr.mxu0 0.0
  %792 = vmatpush1.xpose.msra.mxu0 0.0
  %793 = vmatprep.subr.mxu0 0.0
  %794 = vmatpush1.xpose.msra.mxu0 0.0
  %795 = vmatprep.subr.mxu0 0.0
  %796 = vmatpush1.xpose.msra.mxu0 0.0
  %797 = vmatprep.subr.mxu0 0.0
  %798 = vmatpush1.xpose.msra.mxu0 0.0
  %799 = vmatprep.subr.mxu0 0.0
  %800 = vmatpush1.xpose.msra.mxu0 0.0
  %801 = vmatprep.subr.mxu0 0.0
  %802 = vmatpush1.xpose.msra.mxu0 0.0
  %803 = vmatprep.subr.mxu0 0.0
  %804 = vmatpush1.xpose.msra.mxu0 0.0
  %805 = vmatprep.mubr.f32.mxu0 0.0
  %806 = vmatmul.mubr.f32.gmra.mrb[0].mxu0 %v715
  %v807 = vpop.f32.mrb[0].mxu0
  %v808 = vadd.f32 0.0, %v807
  %v809 = vpop.f32.mrb[0].mxu0
  %810 = vdwg.mxu0
  %811 = vset.pattern.permute.xlu0 32
  %812 = vperm.xlu0 %811, %v676
  %v813 = vpop.permute.xlu0 %812
  %815 = vset.pattern.permute.xlu0 32
  %816 = vperm.xlu0 %815, %v681
  %v817 = vpop.permute.xlu0 %816
  %819 = vset.pattern.permute.xlu0 32
  %820 = vperm.xlu0 %819, %v686
  %v821 = vpop.permute.xlu0 %820
  %823 = vset.pattern.permute.xlu0 32
  %824 = vperm.xlu0 %823, %v691
  %v825 = vpop.permute.xlu0 %824
  %827 = vset.pattern.permute.xlu0 32
  %828 = vperm.xlu0 %827, %v696
  %v829 = vpop.permute.xlu0 %828
  %831 = vset.pattern.permute.xlu0 32
  %832 = vperm.xlu0 %831, %v701
  %v833 = vpop.permute.xlu0 %832
  %835 = vset.pattern.permute.xlu0 32
  %836 = vperm.xlu0 %835, %v706
  %v837 = vpop.permute.xlu0 %836
  %839 = vset.pattern.permute.xlu0 32
  %840 = vperm.xlu0 %839, %v711
  %v841 = vpop.permute.xlu0 %840
  %v843 = vlaneseq
  %v844 = vshrl.u32 %v843, 7
  %v845 = vsub.s32 0, %v844
  %v846 = vrot.slane %v808, %v845
  %v847 = vadd.f32 %v813, %v846
  %v848 = vadd.f32 %v817, %v846
  %v849 = vadd.f32 %v821, %v846
  %v850 = vadd.f32 %v825, %v846
  %v851 = vadd.f32 %v829, %v846
  %v852 = vadd.f32 %v833, %v846
  %v853 = vadd.f32 %v837, %v846
  %v854 = vadd.f32 %v841, %v846
  %vm855 = vcmp.gt.f32.partialorder %v847, 0.0
  %vm856 = vcmp.gt.f32.partialorder %v848, 0.0
  %vm857 = vcmp.gt.f32.partialorder %v849, 0.0
  %vm858 = vcmp.gt.f32.partialorder %v850, 0.0
  %vm859 = vcmp.gt.f32.partialorder %v851, 0.0
  %vm860 = vcmp.gt.f32.partialorder %v852, 0.0
  %vm861 = vcmp.gt.f32.partialorder %v853, 0.0
  %vm862 = vcmp.gt.f32.partialorder %v854, 0.0
  %v863 = vmul.f32 %v847, 0.2
  %v864 = vmul.f32 %v848, 0.2
  %v865 = vmul.f32 %v849, 0.2
  %v866 = vmul.f32 %v850, 0.2
  %v867 = vmul.f32 %v851, 0.2
  %v868 = vmul.f32 %v852, 0.2
  %v869 = vmul.f32 %v853, 0.2
  %v870 = vmul.f32 %v854, 0.2
  %v871 = vsel %vm855, %v847, %v863
  %v872 = vsel %vm856, %v848, %v864
  %v873 = vsel %vm857, %v849, %v865
  %v874 = vsel %vm858, %v850, %v866
  %v875 = vsel %vm859, %v851, %v867
  %v876 = vsel %vm860, %v852, %v868
  %v877 = vsel %vm861, %v853, %v869
  %v878 = vsel %vm862, %v854, %v870
  %v879 = vadd.f32 %v871, %v20
  %v880 = vadd.f32 %v872, %v21
  %v881 = vadd.f32 %v873, %v22
  %v882 = vadd.f32 %v874, %v23
  %v883 = vadd.f32 %v875, %v24
  %v884 = vadd.f32 %v876, %v25
  %v885 = vadd.f32 %v877, %v26
  %v886 = vadd.f32 %v878, %v27
  %v887 = vsel %vm343, %v879, -inf
  %888 = vmax.xlane.f32.xlu0 %v887
  %v889 = vpop.xlane.xlu0 %888
  %v890 = vsel %vm343, %v880, -inf
  %891 = vmax.xlane.f32.xlu0 %v890
  %v892 = vpop.xlane.xlu0 %891
  %v893 = vsel %vm343, %v881, -inf
  %894 = vmax.xlane.f32.xlu0 %v893
  %v895 = vpop.xlane.xlu0 %894
  %v896 = vsel %vm343, %v882, -inf
  %897 = vmax.xlane.f32.xlu0 %v896
  %v898 = vpop.xlane.xlu0 %897
  %v899 = vsel %vm343, %v883, -inf
  %900 = vmax.xlane.f32.xlu0 %v899
  %v901 = vpop.xlane.xlu0 %900
  %v902 = vsel %vm343, %v884, -inf
  %903 = vmax.xlane.f32.xlu0 %v902
  %v904 = vpop.xlane.xlu0 %903
  %v905 = vsel %vm343, %v885, -inf
  %906 = vmax.xlane.f32.xlu0 %v905
  %v907 = vpop.xlane.xlu0 %906
  %v908 = vsel %vm343, %v886, -inf
  %909 = vmax.xlane.f32.xlu0 %v908
  %v910 = vpop.xlane.xlu0 %909
  %v911 = vsub.f32 %v879, %v889
  %v912 = vsub.f32 %v880, %v892
  %v913 = vsub.f32 %v881, %v895
  %v914 = vsub.f32 %v882, %v898
  %v915 = vsub.f32 %v883, %v901
  %v916 = vsub.f32 %v884, %v904
  %v917 = vsub.f32 %v885, %v907
  %v918 = vsub.f32 %v886, %v910
  %v919 = vmul.f32 %v911, 1.442695
  %v920 = vpow.pop %v919
  %v921 = vmul.f32 %v912, 1.442695
  %v922 = vpow.pop %v921
  %v923 = vmul.f32 %v913, 1.442695
  %v924 = vpow.pop %v923
  %v925 = vmul.f32 %v914, 1.442695
  %v926 = vpow.pop %v925
  %v927 = vmul.f32 %v915, 1.442695
  %v928 = vpow.pop %v927
  %v929 = vmul.f32 %v916, 1.442695
  %v930 = vpow.pop %v929
  %v931 = vmul.f32 %v917, 1.442695
  %v932 = vpow.pop %v931
  %v933 = vmul.f32 %v918, 1.442695
  %v934 = vpow.pop %v933
  %v935 = vsel %vm343, %v920, 0.0
  %936 = vadd.xlane.f32.xlu0 %v935
  %v937 = vpop.xlane.xlu0 %936
  %v938 = vsel %vm343, %v922, 0.0
  %939 = vadd.xlane.f32.xlu0 %v938
  %v940 = vpop.xlane.xlu0 %939
  %v941 = vsel %vm343, %v924, 0.0
  %942 = vadd.xlane.f32.xlu0 %v941
  %v943 = vpop.xlane.xlu0 %942
  %v944 = vsel %vm343, %v926, 0.0
  %945 = vadd.xlane.f32.xlu0 %v944
  %v946 = vpop.xlane.xlu0 %945
  %v947 = vsel %vm343, %v928, 0.0
  %948 = vadd.xlane.f32.xlu0 %v947
  %v949 = vpop.xlane.xlu0 %948
  %v950 = vsel %vm343, %v930, 0.0
  %951 = vadd.xlane.f32.xlu0 %v950
  %v952 = vpop.xlane.xlu0 %951
  %v953 = vsel %vm343, %v932, 0.0
  %954 = vadd.xlane.f32.xlu0 %v953
  %v955 = vpop.xlane.xlu0 %954
  %v956 = vsel %vm343, %v934, 0.0
  %957 = vadd.xlane.f32.xlu0 %v956
  %v958 = vpop.xlane.xlu0 %957
  %v960 = vsel %vm343, %v920, 0
  %v963 = vsel %vm343, %v922, 0
  %v966 = vsel %vm343, %v924, 0
  %v969 = vsel %vm343, %v926, 0
  %v972 = vsel %vm343, %v928, 0
  %v975 = vsel %vm343, %v930, 0
  %v978 = vsel %vm343, %v932, 0
  %v981 = vsel %vm343, %v934, 0
  %983 = vmatprep.subr.mxu0 0.0
  %984 = vmatpush1.msra.mxu0 %v676
  %985 = vmatprep.subr.mxu0 0.0
  %986 = vmatpush1.msra.mxu0 %v681
  %987 = vmatprep.subr.mxu0 0.0
  %988 = vmatpush1.msra.mxu0 %v686
  %989 = vmatprep.subr.mxu0 0.0
  %990 = vmatpush1.msra.mxu0 %v691
  %991 = vmatprep.subr.mxu0 0.0
  %992 = vmatpush1.msra.mxu0 %v696
  %993 = vmatprep.subr.mxu0 0.0
  %994 = vmatpush1.msra.mxu0 %v701
  %995 = vmatprep.subr.mxu0 0.0
  %996 = vmatpush1.msra.mxu0 %v706
  %997 = vmatprep.subr.mxu0 0.0
  %998 = vmatpush1.msra.mxu0 %v711
  %999 = vmatprep.subr.mxu0 0.0
  %1000 = vmatpush1.msra.mxu0 0.0
  %1001 = vmatprep.subr.mxu0 0.0
  %1002 = vmatpush1.msra.mxu0 0.0
  %1003 = vmatprep.subr.mxu0 0.0
  %1004 = vmatpush1.msra.mxu0 0.0
  %1005 = vmatprep.subr.mxu0 0.0
  %1006 = vmatpush1.msra.mxu0 0.0
  %1007 = vmatprep.subr.mxu0 0.0
  %1008 = vmatpush1.msra.mxu0 0.0
  %1009 = vmatprep.subr.mxu0 0.0
  %1010 = vmatpush1.msra.mxu0 0.0
  %1011 = vmatprep.subr.mxu0 0.0
  %1012 = vmatpush1.msra.mxu0 0.0
  %1013 = vmatprep.subr.mxu0 0.0
  %1014 = vmatpush1.msra.mxu0 0.0
  %1015 = vmatprep.subr.mxu0 0.0
  %1016 = vmatpush1.msra.mxu0 0.0
  %1017 = vmatprep.subr.mxu0 0.0
  %1018 = vmatpush1.msra.mxu0 0.0
  %1019 = vmatprep.subr.mxu0 0.0
  %1020 = vmatpush1.msra.mxu0 0.0
  %1021 = vmatprep.subr.mxu0 0.0
  %1022 = vmatpush1.msra.mxu0 0.0
  %1023 = vmatprep.subr.mxu0 0.0
  %1024 = vmatpush1.msra.mxu0 0.0
  %1025 = vmatprep.subr.mxu0 0.0
  %1026 = vmatpush1.msra.mxu0 0.0
  %1027 = vmatprep.subr.mxu0 0.0
  %1028 = vmatpush1.msra.mxu0 0.0
  %1029 = vmatprep.subr.mxu0 0.0
  %1030 = vmatpush1.msra.mxu0 0.0
  %1031 = vmatprep.subr.mxu0 0.0
  %1032 = vmatpush1.msra.mxu0 0.0
  %1033 = vmatprep.subr.mxu0 0.0
  %1034 = vmatpush1.msra.mxu0 0.0
  %1035 = vmatprep.subr.mxu0 0.0
  %1036 = vmatpush1.msra.mxu0 0.0
  %1037 = vmatprep.subr.mxu0 0.0
  %1038 = vmatpush1.msra.mxu0 0.0
  %1039 = vmatprep.subr.mxu0 0.0
  %1040 = vmatpush1.msra.mxu0 0.0
  %1041 = vmatprep.subr.mxu0 0.0
  %1042 = vmatpush1.msra.mxu0 0.0
  %1043 = vmatprep.subr.mxu0 0.0
  %1044 = vmatpush1.msra.mxu0 0.0
  %1045 = vmatprep.subr.mxu0 0.0
  %1046 = vmatpush1.msra.mxu0 0.0
  %1047 = vmatprep.mubr.f32.mxu0 0.0
  %1048 = vmatmul.mubr.f32.gmra.mrb[0].mxu0 %v960
  %v1049 = vpop.f32.mrb[0].mxu0
  %v1050 = vadd.f32 0.0, %v1049
  %v1051 = vpop.f32.mrb[0].mxu0
  %1052 = vmatprep.mubr.f32.mxu0 0.0
  %1053 = vmatmul.mubr.f32.gmra.mrb[0].mxu0 %v963
  %v1054 = vpop.f32.mrb[0].mxu0
  %v1055 = vadd.f32 0.0, %v1054
  %v1056 = vpop.f32.mrb[0].mxu0
  %1057 = vmatprep.mubr.f32.mxu0 0.0
  %1058 = vmatmul.mubr.f32.gmra.mrb[0].mxu0 %v966
  %v1059 = vpop.f32.mrb[0].mxu0
  %v1060 = vadd.f32 0.0, %v1059
  %v1061 = vpop.f32.mrb[0].mxu0
  %1062 = vmatprep.mubr.f32.mxu0 0.0
  %1063 = vmatmul.mubr.f32.gmra.mrb[0].mxu0 %v969
  %v1064 = vpop.f32.mrb[0].mxu0
  %v1065 = vadd.f32 0.0, %v1064
  %v1066 = vpop.f32.mrb[0].mxu0
  %1067 = vmatprep.mubr.f32.mxu0 0.0
  %1068 = vmatmul.mubr.f32.gmra.mrb[0].mxu0 %v972
  %v1069 = vpop.f32.mrb[0].mxu0
  %v1070 = vadd.f32 0.0, %v1069
  %v1071 = vpop.f32.mrb[0].mxu0
  %1072 = vmatprep.mubr.f32.mxu0 0.0
  %1073 = vmatmul.mubr.f32.gmra.mrb[0].mxu0 %v975
  %v1074 = vpop.f32.mrb[0].mxu0
  %v1075 = vadd.f32 0.0, %v1074
  %v1076 = vpop.f32.mrb[0].mxu0
  %1077 = vmatprep.mubr.f32.mxu0 0.0
  %1078 = vmatmul.mubr.f32.gmra.mrb[0].mxu0 %v978
  %v1079 = vpop.f32.mrb[0].mxu0
  %v1080 = vadd.f32 0.0, %v1079
  %v1081 = vpop.f32.mrb[0].mxu0
  %1082 = vmatprep.mubr.f32.mxu0 0.0
  %1083 = vmatmul.mubr.f32.gmra.mrb[0].mxu0 %v981
  %v1084 = vpop.f32.mrb[0].mxu0
  %v1085 = vadd.f32 0.0, %v1084
  %v1086 = vpop.f32.mrb[0].mxu0
  %1087 = vdwg.mxu0
  %v1088 = vrcp.pop %v937
  %v1089 = vrcp.pop %v940
  %v1090 = vrcp.pop %v943
  %v1091 = vrcp.pop %v946
  %v1092 = vrcp.pop %v949
  %v1093 = vrcp.pop %v952
  %v1094 = vrcp.pop %v955
  %v1095 = vrcp.pop %v958
  %v1096 = vmul.f32 %v1050, %v1088
  %v1097 = vmul.f32 %v1055, %v1089
  %v1098 = vmul.f32 %v1060, %v1090
  %v1099 = vmul.f32 %v1065, %v1091
  %v1100 = vmul.f32 %v1070, %v1092
  %v1101 = vmul.f32 %v1075, %v1093
  %v1102 = vmul.f32 %v1080, %v1094
  %v1103 = vmul.f32 %v1085, %v1095
  %v1104 = vlaneseq
  %v1105 = vshrl.u32 %v1104, 7
  %v1106 = vsub.s32 3, %v1105
  %v1107 = vrot.slane %v28, %v1106
  %v1108 = vadd.f32 %v1096, %v1107
  %v1109 = vadd.f32 %v1097, %v1107
  %v1110 = vadd.f32 %v1098, %v1107
  %v1111 = vadd.f32 %v1099, %v1107
  %v1112 = vadd.f32 %v1100, %v1107
  %v1113 = vadd.f32 %v1101, %v1107
  %v1114 = vadd.f32 %v1102, %v1107
  %v1115 = vadd.f32 %v1103, %v1107
  %1116 = vst.msk [vmem:[%s5] sm:$0xff] %vm169, %v1108
  %1117 = vst.msk [vmem:[%s5 + $0x8] sm:$0xff] %vm169, %v1109
  %1118 = vst.msk [vmem:[%s5 + $0x10] sm:$0xff] %vm169, %v1110
  %1119 = vst.msk [vmem:[%s5 + $0x18] sm:$0xff] %vm169, %v1111
  %1120 = vst.msk [vmem:[%s5 + $0x20] sm:$0xff] %vm169, %v1112
  %1121 = vst.msk [vmem:[%s5 + $0x28] sm:$0xff] %vm169, %v1113
  %1122 = vst.msk [vmem:[%s5 + $0x30] sm:$0xff] %vm169, %v1114
  %1123 = vst.msk [vmem:[%s5 + $0x38] sm:$0xff] %vm169, %v1115
  // Predicated region
  $region22: #{gat_forward.1} parent=0 // pred_check
    _
  $region23: #{gat_forward.1} parent=0 // pred_check_branch
    %1125 = sbr.rel (0) target = $region25
  $region24: #{gat_forward.1} parent=0 // pred_region
    _
  $region25: #{gat_forward.1} parent=0 // pred_fallthru
    _
  // Predicated region
  $region26: #{gat_forward.1} parent=0 // pred_check
    _
  $region27: #{gat_forward.1} parent=0 // pred_check_branch
    %1127 = sbr.rel (0) target = $region29
  $region28: #{gat_forward.1} parent=0 // pred_region
    _
  $region29: #{gat_forward.1} parent=0 // pred_fallthru
    _

</llo_original>
